<compile_context>
chip_gen: v7x
topology: tpu7x:2x2x1
jax: 0.10.0
libtpu: 0.0.40
codegen_flags: <defaults>
</compile_context>

<pallas_src>
import jax
import jax.numpy as jnp
from jax.experimental import pallas as pl
from jax.experimental.pallas import tpu as pltpu

LANES = 128

_TARGET_BLOCK_BYTES = 4 * 1024 * 1024   # HBM-streaming tile target
_MAX_BLOCK_ROWS = 8192                   # 8192 * 128 = 1M elems -> f32 temps <= 4 MiB
_VMEM_LIMIT = 32 * 1024 * 1024           # raises v5e default, safe on v6e/v7x
_FUSED_MAX_ELEMS = 1024 * 1024           # <= 1M elements -> fused single pass


# ---------------- kernels ----------------

def _fused_norm_kernel(x_ref, o_ref):
    """Single pass: whole slab resident in VMEM.  Read once, write once."""
    x = x_ref[...].astype(jnp.float32)
    mn = jnp.min(x)
    inv = jnp.float32(1.0) / (jnp.max(x) - mn)
    o_ref[...] = ((x - mn) * inv).astype(o_ref.dtype)


def _make_partial_minmax_kernel(block_rows, total_rows):
    """Pass 1: one partial min/max scalar per block ('parallel' grid axis)."""
    rem = total_rows % block_rows        # only the last block can be ragged

    def kernel(x_ref, pmin_ref, pmax_ref):
        x = x_ref[...].astype(jnp.float32)         # (block_rows, 128) tile
        pmin_ref[0, 0] = jnp.min(x)
        pmax_ref[0, 0] = jnp.max(x)
        if rem:
            # Redo the reduction with row masking on the LAST block only, so
            # full blocks never pay the iota/where temporaries (perf review).
            @pl.when(pl.program_id(0) == pl.num_programs(0) - 1)
            def _():
                row_ids = jax.lax.broadcasted_iota(jnp.int32, x.shape, 0)
                valid = row_ids < rem
                pmin_ref[0, 0] = jnp.min(jnp.where(valid, x, jnp.inf))
                pmax_ref[0, 0] = jnp.max(jnp.where(valid, x, -jnp.inf))

    return kernel


def _normalize_kernel(mn_ref, inv_ref, x_ref, o_ref):
    """Pass 2: (x - mn) * inv, stored back in the source dtype."""
    mn = mn_ref[0, 0]
    inv = inv_ref[0, 0]
    o_ref[...] = ((x_ref[...].astype(jnp.float32) - mn) * inv).astype(o_ref.dtype)


# ---------------- wrapper ----------------

def norm_layer(x):
    """Pallas implementation of NormLayer.forward (global min-max normalize)."""
    orig_shape = x.shape
    orig_dtype = x.dtype
    n = x.size
    itemsize = x.dtype.itemsize

    xf = x.reshape(-1)                   # no dtype up-cast in HBM

    # Lane-dense (rows, 128) view.  When n % 128 == 0 this is a free reshape:
    # no pad copy, no output slice (ragged *rows* are handled in-kernel).
    pad = (-n) % LANES
    if pad:
        # TODO(synk): n % 128 != 0 still pays one extra HBM pass for this pad
        # copy + the final slice; a manual-DMA tail path would avoid it.
        xf = jnp.concatenate(
            [xf, jnp.full((pad,), xf[0], dtype=orig_dtype)])   # neutral pad
    rows = (n + pad) // LANES
    x2 = xf.reshape(rows, LANES)

    # ---- Fast path: slab fits in VMEM -> fused single pass (2N bytes).
    if n <= _FUSED_MAX_ELEMS:
        out2 = pl.pallas_call(
            _fused_norm_kernel,
            out_shape=jax.ShapeDtypeStruct((rows, LANES), orig_dtype),
            grid_spec=pltpu.PrefetchScalarGridSpec(
                num_scalar_prefetch=0,
                grid=(1,),
                in_specs=[pl.BlockSpec((rows, LANES), lambda i: (0, 0))],
                out_specs=pl.BlockSpec((rows, LANES), lambda i: (0, 0)),
            ),
            compiler_params=pltpu.CompilerParams(
                vmem_limit_bytes=_VMEM_LIMIT),
            cost_estimate=pl.CostEstimate(
                flops=4 * n, transcendentals=0,
                bytes_accessed=2 * n * itemsize),
        )(x2)
        out = out2.reshape(-1)[:n].reshape(orig_shape) if pad \
            else out2.reshape(orig_shape)
        return out

    # ---- Tiled two-pass path: big blocks, pure HBM streaming.
    block_rows = _TARGET_BLOCK_BYTES // (LANES * itemsize)   # bytes-sized tile
    block_rows = min(block_rows, _MAX_BLOCK_ROWS)            # bound f32 temps
    block_rows = max(32, (block_rows // 32) * 32)            # sublane packing
    block_rows = min(block_rows, rows)                       # may be full height
    num_blocks = pl.cdiv(rows, block_rows)

    # Pass 1: per-block partial min/max, finished with a tiny JAX reduce.
    pmin, pmax = pl.pallas_call(
        _make_partial_minmax_kernel(block_rows, rows),
        out_shape=(
            jax.ShapeDtypeStruct((num_blocks, 1), jnp.float32),
            jax.ShapeDtypeStruct((num_blocks, 1), jnp.float32),
        ),
        grid_spec=pltpu.PrefetchScalarGridSpec(
            num_scalar_prefetch=0,
            grid=(num_blocks,),
            in_specs=[pl.BlockSpec((block_rows, LANES), lambda i: (i, 0))],
            out_specs=(
                pl.BlockSpec((1, 1), lambda i: (i, 0), memory_space=pltpu.SMEM),
                pl.BlockSpec((1, 1), lambda i: (i, 0), memory_space=pltpu.SMEM),
            ),
        ),
        compiler_params=pltpu.CompilerParams(
            dimension_semantics=("parallel",),
            vmem_limit_bytes=_VMEM_LIMIT),
        cost_estimate=pl.CostEstimate(
            flops=2 * n, transcendentals=0, bytes_accessed=n * itemsize),
    )(x2)

    mn = jnp.min(pmin)                           # f32 scalar
    mx = jnp.max(pmax)
    inv = jnp.float32(1.0) / (mx - mn)           # exact reciprocal, once
    mn_s = mn.reshape(1, 1)
    inv_s = inv.reshape(1, 1)

    # Pass 2: elementwise normalize; ragged last output block is clipped on
    # writeback by Pallas (OOB input rows are garbage, normalized, discarded).
    out2 = pl.pallas_call(
        _normalize_kernel,
        out_shape=jax.ShapeDtypeStruct((rows, LANES), orig_dtype),
        grid_spec=pltpu.PrefetchScalarGridSpec(
            num_scalar_prefetch=0,
            grid=(num_blocks,),
            in_specs=[
                pl.BlockSpec(memory_space=pltpu.SMEM),        # mn scalar
                pl.BlockSpec(memory_space=pltpu.SMEM),        # 1/(mx-mn) scalar
                pl.BlockSpec((block_rows, LANES), lambda i: (i, 0)),
            ],
            out_specs=pl.BlockSpec((block_rows, LANES), lambda i: (i, 0)),
        ),
        compiler_params=pltpu.CompilerParams(
            dimension_semantics=("parallel",),
            vmem_limit_bytes=_VMEM_LIMIT),
        cost_estimate=pl.CostEstimate(
            flops=2 * n, transcendentals=0, bytes_accessed=2 * n * itemsize),
    )(mn_s, inv_s, x2)

    out = out2.reshape(-1)
    if pad:
        out = out[:n]
    return out.reshape(orig_shape)


# ---------------- demo / check ----------------

def _reference(x):
    shifted = x - jnp.min(x)
    return shifted / (jnp.max(shifted) - jnp.min(shifted))


if __name__ == "__main__":
    key = jax.random.PRNGKey(0)
    norm = jax.jit(norm_layer)

    # 1) Small NCHW tensor (module-sized) -> exercises the fused VMEM path.
    x_small = jax.random.normal(key, (2, 4, 16, 16), dtype=jnp.float32)
    out_small = jax.block_until_ready(norm(x_small))
    assert out_small.shape == x_small.shape and out_small.dtype == x_small.dtype
    assert jnp.allclose(out_small, _reference(x_small), atol=1e-6, rtol=1e-5), \
        "fused-path mismatch vs reference"

    # 2) Larger tensor (> 1M elems, rows % block_rows != 0) -> exercises the
    #    tiled two-pass path, the pl.when-gated ragged-row mask, and the
    #    partial edge-block writeback that the perf review asked to verify.
    x_big = jax.random.normal(key, (2, 3, 512, 512), dtype=jnp.float32)
    out_big = jax.block_until_ready(norm(x_big))
    assert out_big.shape == x_big.shape and out_big.dtype == x_big.dtype
    assert jnp.allclose(out_big, _reference(x_big), atol=1e-6, rtol=1e-5), \
        "tiled-path mismatch vs reference"

    print("KERNEL_OK")
</pallas_src>

<mosaic_0001>
module attributes {stable_mosaic.version = 11 : i64} {
  func.func @_fused_norm_kernel(%arg0: i32, %arg1: memref<16x128xf32, #tpu.memory_space<vmem>>, %arg2: memref<16x128xf32, #tpu.memory_space<vmem>>) attributes {dimension_semantics = [#tpu.dimension_semantics<arbitrary>], iteration_bounds = array<i64: 1>, scalar_prefetch = 0 : i64, scratch_operands = 0 : i64, tpu.core_type = #tpu.core_type<tc>, window_params = [{pipeline_mode = #tpu.pipeline_mode<synchronous>, transform_indices = @transform_0, window_bounds = array<i64: 16, 128>}, {pipeline_mode = #tpu.pipeline_mode<synchronous>, transform_indices = @transform_1, window_bounds = array<i64: 16, 128>}]} {
    %c0 = arith.constant 0 : index
    %c0_0 = arith.constant 0 : index
    %0 = vector.load %arg1[%c0, %c0_0] : memref<16x128xf32, #tpu.memory_space<vmem>>, vector<16x128xf32>
    %1 = vector.shape_cast %0 : vector<16x128xf32> to vector<1x16x128xf32>
    %cst = arith.constant dense<0x7F800000> : vector<1xf32>
    %2 = vector.multi_reduction <minimumf>, %1, %cst [1, 2] : vector<1x16x128xf32> to vector<1xf32>
    %3 = vector.shape_cast %2 : vector<1xf32> to vector<1x1x1xf32>
    %4 = vector.extract %3[0, 0, 0] : f32 from vector<1x1x1xf32>
    %5 = vector.shape_cast %0 : vector<16x128xf32> to vector<1x16x128xf32>
    %cst_1 = arith.constant dense<0xFF800000> : vector<1xf32>
    %6 = vector.multi_reduction <maximumf>, %5, %cst_1 [1, 2] : vector<1x16x128xf32> to vector<1xf32>
    %7 = vector.shape_cast %6 : vector<1xf32> to vector<1x1x1xf32>
    %8 = vector.extract %7[0, 0, 0] : f32 from vector<1x1x1xf32>
    %9 = arith.subf %8, %4 : f32
    %cst_2 = arith.constant 1.000000e+00 : f32
    %10 = arith.divf %cst_2, %9 : f32
    %11 = vector.broadcast %4 : f32 to vector<16x128xf32>
    %12 = arith.subf %0, %11 : vector<16x128xf32>
    %13 = vector.broadcast %10 : f32 to vector<16x128xf32>
    %14 = arith.mulf %12, %13 : vector<16x128xf32>
    %c0_3 = arith.constant 0 : index
    %c0_4 = arith.constant 0 : index
    %15 = vector.load %arg2[%c0_3, %c0_4] : memref<16x128xf32, #tpu.memory_space<vmem>>, vector<16x128xf32>
    tpu.vector_store %arg2[%c0_3, %c0_4], %14 {strides = array<i32>} : memref<16x128xf32, #tpu.memory_space<vmem>>, vector<16x128xf32>,
    return
  }
  func.func @transform_0(%arg0: i32) -> (i32, i32) {
    %c0_i32 = arith.constant 0 : i32
    %c0_i32_0 = arith.constant 0 : i32
    %c0_i32_1 = arith.constant 0 : i32
    return %c0_i32, %c0_i32_0 : i32, i32
  }
  func.func @transform_1(%arg0: i32) -> (i32, i32) {
    %c0_i32 = arith.constant 0 : i32
    %c0_i32_0 = arith.constant 0 : i32
    %c0_i32_1 = arith.constant 0 : i32
    return %c0_i32, %c0_i32_0 : i32, i32
  }
}

</mosaic_0001>

<llo_original>
// kernel: norm_layer.1
$region0: #{norm_layer.1}
  #allocation0 [shape = 'u32[]', space=smem, size = 0x4, offset = 0x4, fixed_abs, tag = 'smem constant byte address 0x4 - core index']
  #allocation1 [shape = 'u32[144,128]{1,0:T(1,128)}', space=vmem, size = 0x12000, scoped, tag = 'internal scratch']
  %s0 = inlined_call_operand.vmem [shape: f32[16,128], index: 0, kind: input, shape index: {}]
  %s1 = inlined_call_operand.vmem [shape: f32[16,128], index: 1, kind: output, shape index: {}]
  %s2 = sld [smem:[#allocation0]]
  $region14: #{norm_layer.1} parent=0
    _
  %s4 = ssub.s32 1, %s2
  %s5 = scalar_select 0, %s4, %s2
  // Predicated region
  $region2: #{norm_layer.1} parent=0 // pred_check
    _
  $region3: #{norm_layer.1} parent=0 // pred_check_branch
    %7 = sbr.rel (0) target = $region5
  $region4: #{norm_layer.1} parent=0 // pred_region
    _
  $region5: #{norm_layer.1} parent=0 // pred_fallthru
    _
  %v8 = vld [vmem:[%s0] sm:$0xff]
  %v9 = vld [vmem:[%s0 + $0x8] sm:$0xff]
  %v10 = vmin.f32 %v8, %v9
  %11 = vmin.xlane.f32.xlu0 %v10
  %v12 = vpop.xlane.xlu0 %11
  %v13 = vrot.slane %v12, 4
  %v14 = vmin.f32 %v12, %v13
  %v15 = vrot.slane %v14, 2
  %v16 = vmin.f32 %v14, %v15
  %v17 = vrot.slane %v16, 1
  %v18 = vmin.f32 %v16, %v17
  %s19 = vtos %v18
  %v20 = vmax.f32 %v8, %v9
  %21 = vmax.xlane.f32.xlu0 %v20
  %v22 = vpop.xlane.xlu0 %21
  %v23 = vrot.slane %v22, 4
  %v24 = vmax.f32 %v22, %v23
  %v25 = vrot.slane %v24, 2
  %v26 = vmax.f32 %v24, %v25
  %v27 = vrot.slane %v26, 1
  %v28 = vmax.f32 %v26, %v27
  %s29 = vtos %v28
  %s30 = ssub.f32 %s29, %s19
  %v31 = vstv %s30
  %v32 = vrcp.pop %v31
  %s33 = vtos %v32
  %v34 = vstv %s19
  %v35 = vsub.f32 %v8, %v34
  %v36 = vsub.f32 %v9, %v34
  %v37 = vstv %s33
  %v38 = vmul.f32 %v35, %v37
  %v39 = vmul.f32 %v36, %v37
  %40 = vst [vmem:[%s1] sm:$0xff] %v38
  %41 = vst [vmem:[%s1 + $0x8] sm:$0xff] %v39
  // Predicated region
  $region6: #{norm_layer.1} parent=0 // pred_check
    _
  $region7: #{norm_layer.1} parent=0 // pred_check_branch
    %43 = sbr.rel (0) target = $region9
  $region8: #{norm_layer.1} parent=0 // pred_region
    _
  $region9: #{norm_layer.1} parent=0 // pred_fallthru
    _
  // Predicated region
  $region10: #{norm_layer.1} parent=0 // pred_check
    _
  $region11: #{norm_layer.1} parent=0 // pred_check_branch
    %45 = sbr.rel (0) target = $region13
  $region12: #{norm_layer.1} parent=0 // pred_region
    _
  $region13: #{norm_layer.1} parent=0 // pred_fallthru
    _

</llo_original>
